<compile_context>
chip_gen: v5e
topology: v5e:2x2
jax: 0.10.0
libtpu: 0.0.40
codegen_flags: <defaults>
</compile_context>

<pallas_src>
import functools

import jax
import jax.numpy as jnp
from jax import lax
from jax.experimental import pallas as pl
from jax.experimental.pallas import tpu as pltpu


def _round_up(x, m):
    return ((x + m - 1) // m) * m


def _mlp_kernel(x_ref, w1_ref, w2_ref, o_ref, *scratch, nb, n_k):
    """One grid step.

    x_ref  : (nb, tm, C)   token tile(s), MXU operand dtype
    w1_ref : (thd, C)      fc1.weight tile (PyTorch layout)
    w2_ref : (C, thd)      fc2.weight tile (PyTorch layout)
    o_ref  : (nb, C, tm)   NCHW-fused output tile (lane-dense last dim = tm)
    scratch: (acc_ref,) of shape (nb, C, tm) f32, present iff n_k > 1
    """
    w1 = w1_ref[...]
    w2 = w2_ref[...]
    cdt = w2.dtype  # MXU operand dtype (set by the wrapper-side cast)

    def tile_result(i):
        # h = x @ fc1.weight.T : contract on C, f32 MXU accumulation.
        h = lax.dot_general(x_ref[i], w1, (((1,), (1,)), ((), ())),
                            preferred_element_type=jnp.float32)
        h = jnp.maximum(h, 0.0).astype(cdt)        # ReLU in f32 on the VPU
        # y.T = fc2.weight @ relu(h).T computed directly as w2 contracted with
        # h on the hidden axis -> (C, tm): the NCHW permute comes out of the
        # MXU for free (no epilogue transpose / relayout).
        return lax.dot_general(w2, h, (((1,), (1,)), ((), ())),
                               preferred_element_type=jnp.float32)

    if n_k == 1:
        # Hidden dim fully resident: store straight to the output tile.
        for i in range(nb):
            o_ref[i] = tile_result(i).astype(o_ref.dtype)
    else:
        acc_ref, = scratch
        kh = pl.program_id(2)
        for i in range(nb):
            y = tile_result(i)

            @pl.when(kh == 0)
            def _assign(i=i, y=y):
                acc_ref[i] = y              # direct assign, no zero-fill

            @pl.when(kh != 0)
            def _accum(i=i, y=y):
                acc_ref[i] += y

        @pl.when(kh == pl.num_programs(2) - 1)
        def _store():
            o_ref[...] = acc_ref[...].astype(o_ref.dtype)


def mlp_forward(x_nhwc, w1, w2, *, tm=None, compute_dtype="auto",
                vmem_limit_bytes=None):
    """convformer.Mlp forward.

    x_nhwc : (B, H, W, C)  channels-last activations (nn.Linear acts on C).
    w1     : (Hd, C)       fc1.weight (PyTorch layout, bias=False).
    w2     : (C, Hd)       fc2.weight (PyTorch layout, bias=False).
    Returns (B, C, H, W) == fc2(relu(fc1(x))).permute(0, 3, 1, 2).

    compute_dtype: MXU operand dtype. "auto" -> bfloat16 for float32 inputs
    (bf16 operands / f32 accumulation / f32 ReLU: the fast path on v5e/v6e/v7x).
    Pass jnp.float32 for a path numerically matching the f32 reference.
    """
    B, H, W, C = x_nhwc.shape
    Hd, C1 = w1.shape
    assert C1 == C and w2.shape == (C, Hd)
    out_dtype = x_nhwc.dtype

    if isinstance(compute_dtype, str) and compute_dtype == "auto":
        compute_dtype = jnp.bfloat16 if x_nhwc.dtype == jnp.float32 else x_nhwc.dtype
    compute_dtype = jnp.dtype(compute_dtype)
    c_size = compute_dtype.itemsize
    o_size = jnp.dtype(out_dtype).itemsize

    # ---- device-aware budgets ------------------------------------------------
    try:
        vmem_cap = pltpu.get_tpu_info().vmem_capacity_bytes
    except Exception:           # not queryable: assume the small (v7x) VMEM
        vmem_cap = 64 * 1024 * 1024
    if vmem_limit_bytes is None:
        # ~38 MiB on v7x (64 MiB/TC), ~76 MiB on v5e/v6e (128 MiB).
        vmem_limit_bytes = min(int(vmem_cap * 0.6), 100 * 1024 * 1024)
    weight_budget = max(4 * 1024 * 1024, vmem_cap // 5)

    # ---- token tiling: target tokens per grid step ---------------------------
    if tm is None:
        target = 1024 if vmem_cap >= 96 * 1024 * 1024 else 512
        if c_size <= 2 and C <= 512:
            target *= 2
    else:
        target = tm
    target = max(128, (target // 128) * 128)        # lane-dense / (8,128) guard

    HW = H * W
    HW_pad128 = _round_up(HW, 128)
    if HW_pad128 > target:
        # Large images: tile the token axis within each image (balanced tiles).
        nb = 1
        n_m = -(-HW_pad128 // target)
        tmi = _round_up(-(-HW_pad128 // n_m), 128)
        HW_pad = tmi * n_m
    else:
        # Small images: fold whole images into one grid step.
        HW_pad = HW_pad128
        tmi = HW_pad
        n_m = 1
        nb = max(1, min(B, target // HW_pad))
        # Keep >= 2 "parallel" grid steps (feeds both v7x TensorCores) as long
        # as that does not shrink the tile below ~256 tokens.
        while nb > 1 and (B // nb) < 2 and (nb // 2) * HW_pad >= 256:
            nb //= 2
        while B % nb:
            nb -= 1

    # ---- hidden-dim tiling: keep weights VMEM-resident whenever they fit -----
    weight_bytes = 2 * Hd * C * c_size
    thd = Hd
    if weight_bytes > weight_budget and Hd % 128 == 0:
        for cand in (4096, 2048, 1024, 512, 256, 128):
            if Hd % cand == 0 and 2 * (2 * cand * C * c_size) <= weight_budget:
                thd = cand
                break
    n_k = Hd // thd

    # ---- shrink tiles if the rough VMEM estimate exceeds the budget ----------
    def _vmem_estimate(nb_, tmi_):
        x_b = 2 * nb_ * tmi_ * C * c_size           # double-buffered input tile
        o_b = 2 * nb_ * C * tmi_ * o_size           # double-buffered output tile
        a_b = nb_ * C * tmi_ * 4 if n_k > 1 else 0  # f32 accumulator
        w_b = (1 if n_k == 1 else 2) * 2 * thd * C * c_size
        return x_b + o_b + a_b + w_b

    while _vmem_estimate(nb, tmi) > 0.8 * vmem_limit_bytes:
        if nb > 1:
            nb = max(1, nb // 2)
            while B % nb:
                nb -= 1
        elif tmi >= 256:
            tmi = max(128, (tmi // 2) // 128 * 128)
            HW_pad = _round_up(HW, tmi)
            n_m = HW_pad // tmi
        else:
            break

    # ---- prepare operands (cast once on the XLA side) ------------------------
    x_tok = x_nhwc.reshape(B, HW, C)
    if HW_pad != HW:
        # Zero padding is exact: bias-free Linears map zero tokens to zero
        # outputs, and the padded columns are sliced off below.
        x_tok = jnp.pad(x_tok, ((0, 0), (0, HW_pad - HW), (0, 0)))
    x_tok = x_tok.astype(compute_dtype)
    w1c = w1.astype(compute_dtype)
    w2c = w2.astype(compute_dtype)

    # Constant-index (fully resident) weight blocks only need one VMEM buffer.
    w_mode = dict(pipeline_mode=pl.Buffered(1)) if n_k == 1 else {}
    scratch = [pltpu.VMEM((nb, C, tmi), jnp.float32)] if n_k > 1 else []

    out = pl.pallas_call(
        functools.partial(_mlp_kernel, nb=nb, n_k=n_k),
        out_shape=jax.ShapeDtypeStruct((B, C, HW_pad), out_dtype),
        grid_spec=pltpu.PrefetchScalarGridSpec(
            num_scalar_prefetch=0,
            grid=(B // nb, n_m, n_k),                       # reduction axis last
            in_specs=[
                pl.BlockSpec((nb, tmi, C), lambda g, m, k: (g, m, 0)),
                pl.BlockSpec((thd, C), lambda g, m, k: (k, 0), **w_mode),
                pl.BlockSpec((C, thd), lambda g, m, k: (0, k), **w_mode),
            ],
            out_specs=pl.BlockSpec((nb, C, tmi), lambda g, m, k: (g, 0, m)),
            scratch_shapes=scratch,
        ),
        compiler_params=pltpu.CompilerParams(
            dimension_semantics=("parallel", "parallel", "arbitrary"),
            vmem_limit_bytes=vmem_limit_bytes),
    )(x_tok, w1c, w2c)

    if HW_pad != HW:
        out = out[:, :, :HW]
    return out.reshape(B, C, H, W)      # already NCHW; no extra XLA transpose


def mlp_reference(x_nhwc, w1, w2):
    h = jnp.maximum(x_nhwc @ w1.T, 0.0)
    y = h @ w2.T
    return jnp.transpose(y, (0, 3, 1, 2))


if __name__ == "__main__":
    inplanes = 8
    mlp_ratio = 4
    hidden = inplanes * mlp_ratio      # 32
    B, H, W = 2, 16, 16

    key = jax.random.PRNGKey(0)
    kx, k1, k2 = jax.random.split(key, 3)
    x = jax.random.normal(kx, (B, H, W, inplanes), dtype=jnp.float32)
    # Deterministic synthetic weights with nn.Linear-like scale (fan-in uniform).
    w1 = jax.random.uniform(k1, (hidden, inplanes), dtype=jnp.float32,
                            minval=-1.0, maxval=1.0) / jnp.sqrt(inplanes)
    w2 = jax.random.uniform(k2, (inplanes, hidden), dtype=jnp.float32,
                            minval=-1.0, maxval=1.0) / jnp.sqrt(hidden)

    ref = mlp_reference(x, w1, w2)

    # f32 MXU-operand path (numerically comparable to the f32 reference).
    out_f32 = jax.block_until_ready(
        mlp_forward(x, w1, w2, compute_dtype=jnp.float32))
    assert out_f32.shape == (B, inplanes, H, W)
    assert jnp.allclose(out_f32, ref, atol=1e-5, rtol=1e-5)

    # Default path: bf16 MXU operands, f32 accumulation (TPU fast path).
    out_bf16 = jax.block_until_ready(mlp_forward(x, w1, w2))
    assert out_bf16.shape == (B, inplanes, H, W)
    assert jnp.allclose(out_bf16, ref, atol=5e-2, rtol=5e-2)

    print("KERNEL_OK")
</pallas_src>

<mosaic_0001>
module attributes {stable_mosaic.version = 11 : i64} {
  func.func @_mlp_kernel(%arg0: i32, %arg1: i32, %arg2: i32, %arg3: memref<1x256x8xf32, #tpu.memory_space<vmem>>, %arg4: memref<32x8xf32, #tpu.memory_space<vmem>>, %arg5: memref<8x32xf32, #tpu.memory_space<vmem>>, %arg6: memref<1x8x256xf32, #tpu.memory_space<vmem>>) attributes {dimension_semantics = [#tpu.dimension_semantics<parallel>, #tpu.dimension_semantics<parallel>, #tpu.dimension_semantics<arbitrary>], iteration_bounds = array<i64: 2, 1, 1>, scalar_prefetch = 0 : i64, scratch_operands = 0 : i64, tpu.core_type = #tpu.core_type<tc>, window_params = [{transform_indices = @transform_0, window_bounds = array<i64: 1, 256, 8>}, {pipeline_mode = #tpu.pipeline_mode<synchronous>, transform_indices = @transform_1, window_bounds = array<i64: 32, 8>}, {pipeline_mode = #tpu.pipeline_mode<synchronous>, transform_indices = @transform_2, window_bounds = array<i64: 8, 32>}, {transform_indices = @transform_3, window_bounds = array<i64: 1, 8, 256>}]} {
    %c0 = arith.constant 0 : index
    %c0_0 = arith.constant 0 : index
    %0 = vector.load %arg4[%c0, %c0_0] : memref<32x8xf32, #tpu.memory_space<vmem>>, vector<32x8xf32>
    %c0_1 = arith.constant 0 : index
    %c0_2 = arith.constant 0 : index
    %1 = vector.load %arg5[%c0_1, %c0_2] : memref<8x32xf32, #tpu.memory_space<vmem>>, vector<8x32xf32>
    %c0_3 = arith.constant 0 : index
    %c0_4 = arith.constant 0 : index
    %c0_5 = arith.constant 0 : index
    %2 = vector.load %arg3[%c0_3, %c0_4, %c0_5] : memref<1x256x8xf32, #tpu.memory_space<vmem>>, vector<1x256x8xf32>
    %3 = vector.shape_cast %2 : vector<1x256x8xf32> to vector<256x8xf32>
    %cst = arith.constant dense<0.000000e+00> : vector<256x32xf32>
    %4 = tpu.matmul %3, %0, %cst {dimension_numbers = #tpu.dot_dimension_numbers<[1], [1], [0], [0], [0, 0, 1, 0], [], []>} : vector<256x8xf32>, vector<32x8xf32>, vector<256x32xf32> -> vector<256x32xf32>
    %cst_6 = arith.constant 0.000000e+00 : f32
    %5 = vector.broadcast %cst_6 : f32 to vector<256x32xf32>
    %6 = arith.maximumf %4, %5 : vector<256x32xf32>
    %cst_7 = arith.constant dense<0.000000e+00> : vector<8x256xf32>
    %7 = tpu.matmul %1, %6, %cst_7 {dimension_numbers = #tpu.dot_dimension_numbers<[1], [1], [0], [0], [0, 0, 1, 0], [], []>} : vector<8x32xf32>, vector<256x32xf32>, vector<8x256xf32> -> vector<8x256xf32>
    %c0_8 = arith.constant 0 : index
    %c0_9 = arith.constant 0 : index
    %c0_10 = arith.constant 0 : index
    %8 = vector.load %arg6[%c0_8, %c0_9, %c0_10] : memref<1x8x256xf32, #tpu.memory_space<vmem>>, vector<1x8x256xf32>
    %9 = vector.shape_cast %8 : vector<1x8x256xf32> to vector<8x256xf32>
    %10 = vector.shape_cast %7 : vector<8x256xf32> to vector<1x8x256xf32>
    tpu.vector_store %arg6[%c0_8, %c0_9, %c0_10], %10 {strides = array<i32>} : memref<1x8x256xf32, #tpu.memory_space<vmem>>, vector<1x8x256xf32>,
    return
  }
  func.func @transform_0(%arg0: i32, %arg1: i32, %arg2: i32) -> (i32, i32, i32) {
    %c0_i32 = arith.constant 0 : i32
    %c0_i32_0 = arith.constant 0 : i32
    return %arg0, %arg1, %c0_i32 : i32, i32, i32
  }
  func.func @transform_1(%arg0: i32, %arg1: i32, %arg2: i32) -> (i32, i32) {
    %c0_i32 = arith.constant 0 : i32
    %c0_i32_0 = arith.constant 0 : i32
    return %arg2, %c0_i32 : i32, i32
  }
  func.func @transform_2(%arg0: i32, %arg1: i32, %arg2: i32) -> (i32, i32) {
    %c0_i32 = arith.constant 0 : i32
    %c0_i32_0 = arith.constant 0 : i32
    return %c0_i32, %arg2 : i32, i32
  }
  func.func @transform_3(%arg0: i32, %arg1: i32, %arg2: i32) -> (i32, i32, i32) {
    %c0_i32 = arith.constant 0 : i32
    %c0_i32_0 = arith.constant 0 : i32
    return %arg0, %c0_i32, %arg1 : i32, i32, i32
  }
}

</mosaic_0001>

<llo_original>
// kernel: tpu_custom_call.1
$region0: #{tpu_custom_call.1}
  #allocation0 [shape = 'u32[]', space=smem, size = 0x4, offset = 0x4, fixed_abs, tag = 'smem constant byte address 0x4 - core index']
  #allocation1 [shape = 'u32[72,128]{1,0:T(1,128)}', space=vmem, size = 0x9000, scoped, tag = 'internal scratch']
  %s0 = inlined_call_operand.vmem [shape: f32[2,256,8], index: 0, kind: input, shape index: {}]
  %s1 = inlined_call_operand.vmem [shape: f32[32,8], index: 1, kind: input, shape index: {}]
  %s2 = inlined_call_operand.vmem [shape: f32[8,32], index: 2, kind: input, shape index: {}]
  %s3 = inlined_call_operand.hbm [shape: f32[2,8,256], index: 3, kind: output, shape index: {}]
  %s4 = sld [smem:[#allocation0]]
  $region45: #{tpu_custom_call.1} parent=0
    _
  %s6 = ssub.s32 1, %s4
  %s7 = scalar_select 0, %s6, %s4
  $region1: #{tpu_custom_call.1} parent=0
    #allocation2 [shape = 'u8[16384]{0}', space=vmem, size = 0x4000, scoped, tag = 'output window, operand 0']
    #allocation3 [shape = 's32[2]{0}', space=sflag, size = 0x8, scoped, tag = 'scoped memory for tpu_custom_call.1']
    %8 = vsyncpa [#allocation3], 0
    %s9 = scalar_lea.sflag [#allocation3], 1
    %10 = vsyncpa %s9, 0
    loop: start=0, step=1, limit=4
    $region2: #{tpu_custom_call.1} parent=1 // loop_pre_header
      _
    $region3: #{tpu_custom_call.1} parent=1 // loop_header
      %s12 = sphi 0, %s16
      %p13 = scmp.ge.s32.totalorder %s12, 4
      %s19 = sphi 0, %s38
      %s20 = sphi 0, %s34
      %s21 = sphi 0, %s30
      %s22 = sphi 0, %s19
      %s23 = sphi 0, %s20
      %s24 = sphi 0, %s21
      %s25 = sphi 0, %s22
      %s26 = sphi 0, %s23
      %s27 = sphi 0, %s24
      %s43 = sphi 0, %s45
      %s46 = sphi 0, %s43
      %s47 = sphi 0, %s46
      %s63 = sphi 0, %s47
      %s69 = sphi 0, %s71
      %s72 = sphi 0, %s69
      %s73 = sphi 0, %s72
      %s89 = sphi 0, %s73
      %s95 = sphi 0, %s97
      %s98 = sphi 0, %s95
      %s99 = sphi 0, %s98
      %s115 = sphi 0, %s99
      %s123 = sphi 0, %s125
      %s126 = sphi 0, %s123
      %s127 = sphi 0, %s126
      %s143 = sphi 0, %s127
    $region4: #{tpu_custom_call.1} parent=1 // loop_header_branch
      %15 = sbr.rel (%p13) target = $region8
    $region5: #{tpu_custom_call.1} parent=1 // loop_body
      %s17 = ssub.s32 %s12, 1
      %s18 = ssub.s32 %s12, 2
      %s28 = sadd.s32 1, %s21
      %p29 = scmp.ge.s32.totalorder %s28, 1
      %s30 = scalar_select %p29, 0, %s28
      %s31 = sadd.s32 1, %s20
      %s32 = scalar_select %p29, %s31, %s20
      %p33 = scmp.ge.s32.totalorder %s32, 1
      %s34 = scalar_select %p33, 0, %s32
      %s35 = sadd.s32 1, %s19
      %s36 = scalar_select %p33, %s35, %s19
      %p37 = scmp.ge.s32.totalorder %s36, 2
      %s38 = scalar_select %p37, 0, %s36
      %s39 = ssub.s32 %s19, %s38
      %s40 = ssub.s32 %s20, %s34
      %s41 = sor.u32 %s39, %s40
      %p42 = scmp.eq.s32.totalorder %s41, 0
      %s44 = sadd.s32 %s43, 1
      %s45 = scalar_select %p42, %s43, %s44
      %p48 = pneg %p42
      %p49 = scmp.eq.s32.totalorder %s12, 1
      %p50 = por %p48, %p49
      %p51 = scmp.ne.s32.totalorder %s43, %s46
      %p52 = scmp.eq.s32.totalorder %s12, 0
      %p53 = por %p51, %p52
      %p54 = scmp.ne.s32.totalorder %s43, %s46
      %p55 = scmp.eq.s32.totalorder %s17, 1
      %p56 = por %p54, %p55
      %p57 = scmp.ne.s32.totalorder %s46, %s47
      %p58 = scmp.eq.s32.totalorder %s17, 0
      %p59 = por %p57, %p58
      %p60 = scmp.ne.s32.totalorder %s46, %s47
      %p61 = scmp.eq.s32.totalorder %s18, 1
      %p62 = por %p60, %p61
      %p64 = scmp.ne.s32.totalorder %s47, %s63
      %p65 = scmp.eq.s32.totalorder %s18, 0
      %p66 = por %p64, %p65
      %s67 = ssub.s32 %s21, %s30
      %p68 = scmp.eq.s32.totalorder %s67, 0
      %s70 = sadd.s32 %s69, 1
      %s71 = scalar_select %p68, %s69, %s70
      %p74 = pneg %p68
      %p75 = scmp.eq.s32.totalorder %s12, 1
      %p76 = por %p74, %p75
      %p77 = scmp.ne.s32.totalorder %s69, %s72
      %p78 = scmp.eq.s32.totalorder %s12, 0
      %p79 = por %p77, %p78
      %p80 = scmp.ne.s32.totalorder %s69, %s72
      %p81 = scmp.eq.s32.totalorder %s17, 1
      %p82 = por %p80, %p81
      %p83 = scmp.ne.s32.totalorder %s72, %s73
      %p84 = scmp.eq.s32.totalorder %s17, 0
      %p85 = por %p83, %p84
      %p86 = scmp.ne.s32.totalorder %s72, %s73
      %p87 = scmp.eq.s32.totalorder %s18, 1
      %p88 = por %p86, %p87
      %p90 = scmp.ne.s32.totalorder %s73, %s89
      %p91 = scmp.eq.s32.totalorder %s18, 0
      %p92 = por %p90, %p91
      %s93 = ssub.s32 %s21, %s30
      %p94 = scmp.eq.s32.totalorder %s93, 0
      %s96 = sadd.s32 %s95, 1
      %s97 = scalar_select %p94, %s95, %s96
      %p100 = pneg %p94
      %p101 = scmp.eq.s32.totalorder %s12, 1
      %p102 = por %p100, %p101
      %p103 = scmp.ne.s32.totalorder %s95, %s98
      %p104 = scmp.eq.s32.totalorder %s12, 0
      %p105 = por %p103, %p104
      %p106 = scmp.ne.s32.totalorder %s95, %s98
      %p107 = scmp.eq.s32.totalorder %s17, 1
      %p108 = por %p106, %p107
      %p109 = scmp.ne.s32.totalorder %s98, %s99
      %p110 = scmp.eq.s32.totalorder %s17, 0
      %p111 = por %p109, %p110
      %p112 = scmp.ne.s32.totalorder %s98, %s99
      %p113 = scmp.eq.s32.totalorder %s18, 1
      %p114 = por %p112, %p113
      %p116 = scmp.ne.s32.totalorder %s99, %s115
      %p117 = scmp.eq.s32.totalorder %s18, 0
      %p118 = por %p116, %p117
      %s119 = ssub.s32 %s19, %s38
      %s120 = ssub.s32 %s20, %s34
      %s121 = sor.u32 %s119, %s120
      %p122 = scmp.eq.s32.totalorder %s121, 0
      %s124 = sadd.s32 %s123, 1
      %s125 = scalar_select %p122, %s123, %s124
      %p128 = pneg %p122
      %p129 = scmp.eq.s32.totalorder %s12, 1
      %p130 = por %p128, %p129
      %p131 = scmp.ne.s32.totalorder %s123, %s126
      %p132 = scmp.eq.s32.totalorder %s12, 0
      %p133 = por %p131, %p132
      %p134 = scmp.ne.s32.totalorder %s123, %s126
      %p135 = scmp.eq.s32.totalorder %s17, 1
      %p136 = por %p134, %p135
      %p137 = scmp.ne.s32.totalorder %s126, %s127
      %p138 = scmp.eq.s32.totalorder %s17, 0
      %p139 = por %p137, %p138
      %p140 = scmp.ne.s32.totalorder %s126, %s127
      %p141 = scmp.eq.s32.totalorder %s18, 1
      %p142 = por %p140, %p141
      %p144 = scmp.ne.s32.totalorder %s127, %s143
      %p145 = scmp.eq.s32.totalorder %s18, 0
      %p146 = por %p144, %p145
      %p147 = scmp.le.s32.totalorder 1, %s12
      %p148 = scmp.lt.s32.totalorder %s12, 3
      %p149 = pnand %p147, %p148
      %p150 = pneg %p149
      // Predicated region
      $region9: #{tpu_custom_call.1} parent=5 // pred_check
        _
      $region10: #{tpu_custom_call.1} parent=5 // pred_check_branch
        %152 = sbr.rel (%p149) target = $region12
      $region11: #{tpu_custom_call.1} parent=5 // pred_region
        %s153 = ssub.s32 %s12, 1
        // Predicated region
        $region13: #{tpu_custom_call.1} parent=11 // pred_check
          %p154 = pneg %p85
        $region14: #{tpu_custom_call.1} parent=11 // pred_check_branch
          %156 = sbr.rel (%p154) target = $region16
        $region15: #{tpu_custom_call.1} parent=11 // pred_region
          %s157 = smul.u32 4, %s24
          %p158 = scmp.lt.s32.totalorder %s157, 3
          %s159 = scalar_select %p158, %s157, 3
          %s160 = smul.addr %s159, 8
          %s161 = scalar_lea.vmem %s1, %s160
          %s162 = smul.u32 4, %s24
        $region16: #{tpu_custom_call.1} parent=11 // pred_fallthru
          _
        // Predicated region
        $region17: #{tpu_custom_call.1} parent=11 // pred_check
          %p163 = pneg %p111
        $region18: #{tpu_custom_call.1} parent=11 // pred_check_branch
          %165 = sbr.rel (%p163) target = $region20
        $region19: #{tpu_custom_call.1} parent=11 // pred_region
          %p166 = scmp.lt.s32.totalorder %s24, 0
          %s167 = scalar_select %p166, %s24, 0
          %s168 = smul.addr %s167, 8
          %s169 = scalar_lea.vmem %s2, %s168
        $region20: #{tpu_custom_call.1} parent=11 // pred_fallthru
          _
      $region12: #{tpu_custom_call.1} parent=5 // pred_fallthru
        _
      %p170 = scmp.lt.s32.totalorder %s12, 2
      // Predicated region
      $region21: #{tpu_custom_call.1} parent=5 // pred_check
        %p171 = pneg %p170
      $region22: #{tpu_custom_call.1} parent=5 // pred_check_branch
        %173 = sbr.rel (%p171) target = $region24
      $region23: #{tpu_custom_call.1} parent=5 // pred_region
        // Predicated region
        $region25: #{tpu_custom_call.1} parent=23 // pred_check
          %p174 = pneg %p53
        $region26: #{tpu_custom_call.1} parent=23 // pred_check_branch
          %176 = sbr.rel (%p174) target = $region28
        $region27: #{tpu_custom_call.1} parent=23 // pred_region
          %s177 = smul.u32 32, %s20
          %p178 = scmp.lt.s32.totalorder %s19, 1
          %s179 = scalar_select %p178, %s19, 1
          %p180 = scmp.lt.s32.totalorder %s177, 31
          %s181 = scalar_select %p180, %s177, 31
          %s182 = smul.addr %s179, 32
          %s183 = sadd.s32 %s181, %s182
          %s184 = smul.addr %s183, 8
          %s185 = scalar_lea.vmem %s0, %s184
          %s186 = smul.u32 32, %s20
        $region28: #{tpu_custom_call.1} parent=23 // pred_fallthru
          _
      $region24: #{tpu_custom_call.1} parent=5 // pred_fallthru
        _
      %p187 = scmp.le.s32.totalorder 1, %s12
      %p188 = scmp.lt.s32.totalorder %s12, 3
      %p189 = pnand %p187, %p188
      %p190 = pneg %p189
      // Predicated region
      $region29: #{tpu_custom_call.1} parent=5 // pred_check
        _
      $region30: #{tpu_custom_call.1} parent=5 // pred_check_branch
        %192 = sbr.rel (%p189) target = $region32
      $region31: #{tpu_custom_call.1} parent=5 // pred_region
        %s193 = ssub.s32 %s12, 1
        %s194 = smul.u32 32, %s23
        %p195 = scmp.lt.s32.totalorder %s22, 1
        %s196 = scalar_select %p195, %s22, 1
        %p197 = scmp.lt.s32.totalorder %s194, 31
        %s198 = scalar_select %p197, %s194, 31
        %s199 = smul.addr %s196, 32
        %s200 = sadd.s32 %s198, %s199
        %s201 = smul.addr %s200, 8
        %s202 = scalar_lea.vmem %s0, %s201
        %p203 = pneg %p59
        %p204 = pneg %p56
        %s205 = smul.u32 4, %s24
        %p206 = scmp.lt.s32.totalorder %s205, 3
        %s207 = scalar_select %p206, %s205, 3
        %s208 = smul.addr %s207, 8
        %s209 = scalar_lea.vmem %s1, %s208
        %p210 = pneg %p85
        %p211 = pneg %p82
        %p212 = scmp.lt.s32.totalorder %s24, 0
        %s213 = scalar_select %p212, %s24, 0
        %s214 = smul.addr %s213, 8
        %s215 = scalar_lea.vmem %s2, %s214
        %p216 = pneg %p111
        %p217 = pneg %p108
        %p218 = pneg %p139
        %p219 = pneg %p136
        %s220 = sand.u32 %s126, 1
        %s221 = scalar_lea.sflag [#allocation3], %s220
        %s222 = sand.u32 %s126, 1
        %s223 = smul.addr %s222, 16
        %s224 = scalar_lea.vmem [#allocation2], %s223
        %s225 = smul.u32 32, %s23
        %p226 = scmp.lt.s32.totalorder %s22, 1
        %s227 = scalar_select %p226, %s22, 1
        %p228 = scmp.lt.s32.totalorder %s225, 31
        %s229 = scalar_select %p228, %s225, 31
        %s230 = smul.addr %s227, 32
        %s231 = sadd.s32 %s229, %s230
        %s232 = smul.addr %s231, 8
        %s233 = scalar_lea.vmem %s0, %s232
        %s234 = smul.u32 32, %s23
        %s235 = smul.u32 4, %s24
        %p236 = scmp.lt.s32.totalorder %s235, 3
        %s237 = scalar_select %p236, %s235, 3
        %s238 = smul.addr %s237, 8
        %s239 = scalar_lea.vmem %s1, %s238
        %s240 = smul.u32 4, %s24
        %p241 = scmp.lt.s32.totalorder %s24, 0
        %s242 = scalar_select %p241, %s24, 0
        %s243 = smul.addr %s242, 8
        %s244 = scalar_lea.vmem %s2, %s243
        %s245 = smul.u32 2, %s23
        %v246 = vld [vmem:[%s239] sm:$0xff]
        %v247 = vld [vmem:[%s239 + $0x8] sm:$0xff]
        %v248 = vld [vmem:[%s239 + $0x10] sm:$0xff]
        %v249 = vld [vmem:[%s239 + $0x18] sm:$0xff]
        %v250 = vld [vmem:[%s244] sm:$0xff]
        %v251 = vld [vmem:[%s233] sm:$0xff]
        %v252 = vld [vmem:[%s233 + $0x8] sm:$0xff]
        %v253 = vld [vmem:[%s233 + $0x10] sm:$0xff]
        %v254 = vld [vmem:[%s233 + $0x18] sm:$0xff]
        %v255 = vld [vmem:[%s233 + $0x20] sm:$0xff]
        %v256 = vld [vmem:[%s233 + $0x28] sm:$0xff]
        %v257 = vld [vmem:[%s233 + $0x30] sm:$0xff]
        %v258 = vld [vmem:[%s233 + $0x38] sm:$0xff]
        %v259 = vld [vmem:[%s233 + $0x40] sm:$0xff]
        %v260 = vld [vmem:[%s233 + $0x48] sm:$0xff]
        %v261 = vld [vmem:[%s233 + $0x50] sm:$0xff]
        %v262 = vld [vmem:[%s233 + $0x58] sm:$0xff]
        %v263 = vld [vmem:[%s233 + $0x60] sm:$0xff]
        %v264 = vld [vmem:[%s233 + $0x68] sm:$0xff]
        %v265 = vld [vmem:[%s233 + $0x70] sm:$0xff]
        %v266 = vld [vmem:[%s233 + $0x78] sm:$0xff]
        %v267 = vld [vmem:[%s233 + $0x80] sm:$0xff]
        %v268 = vld [vmem:[%s233 + $0x88] sm:$0xff]
        %v269 = vld [vmem:[%s233 + $0x90] sm:$0xff]
        %v270 = vld [vmem:[%s233 + $0x98] sm:$0xff]
        %v271 = vld [vmem:[%s233 + $0xa0] sm:$0xff]
        %v272 = vld [vmem:[%s233 + $0xa8] sm:$0xff]
        %v273 = vld [vmem:[%s233 + $0xb0] sm:$0xff]
        %v274 = vld [vmem:[%s233 + $0xb8] sm:$0xff]
        %v275 = vld [vmem:[%s233 + $0xc0] sm:$0xff]
        %v276 = vld [vmem:[%s233 + $0xc8] sm:$0xff]
        %v277 = vld [vmem:[%s233 + $0xd0] sm:$0xff]
        %v278 = vld [vmem:[%s233 + $0xd8] sm:$0xff]
        %v279 = vld [vmem:[%s233 + $0xe0] sm:$0xff]
        %v280 = vld [vmem:[%s233 + $0xe8] sm:$0xff]
        %v281 = vld [vmem:[%s233 + $0xf0] sm:$0xff]
        %v282 = vld [vmem:[%s233 + $0xf8] sm:$0xff]
        %vm283 = vcmask 64512
        %v285 = vsel %vm283, %v251, 0
        %v288 = vsel %vm283, %v252, 0
        %v291 = vsel %vm283, %v253, 0
        %v294 = vsel %vm283, %v254, 0
        %v297 = vsel %vm283, %v255, 0
        %v300 = vsel %vm283, %v256, 0
        %v303 = vsel %vm283, %v257, 0
        %v306 = vsel %vm283, %v258, 0
        %v309 = vsel %vm283, %v259, 0
        %v312 = vsel %vm283, %v260, 0
        %v315 = vsel %vm283, %v261, 0
        %v318 = vsel %vm283, %v262, 0
        %v321 = vsel %vm283, %v263, 0
        %v324 = vsel %vm283, %v264, 0
        %v327 = vsel %vm283, %v265, 0
        %v330 = vsel %vm283, %v266, 0
        %v333 = vsel %vm283, %v267, 0
        %v336 = vsel %vm283, %v268, 0
        %v339 = vsel %vm283, %v269, 0
        %v342 = vsel %vm283, %v270, 0
        %v345 = vsel %vm283, %v271, 0
        %v348 = vsel %vm283, %v272, 0
        %v351 = vsel %vm283, %v273, 0
        %v354 = vsel %vm283, %v274, 0
        %v357 = vsel %vm283, %v275, 0
        %v360 = vsel %vm283, %v276, 0
        %v363 = vsel %vm283, %v277, 0
        %v366 = vsel %vm283, %v278, 0
        %v369 = vsel %vm283, %v279, 0
        %v372 = vsel %vm283, %v280, 0
        %v375 = vsel %vm283, %v281, 0
        %v378 = vsel %vm283, %v282, 0
        %v381 = vsel %vm283, %v246, 0
        %v384 = vsel %vm283, %v247, 0
        %v387 = vsel %vm283, %v248, 0
        %v390 = vsel %vm283, %v249, 0
        %392 = vmatpush.xpose.msra.mxu0 0.0
        %393 = vmatpush.xpose.msra.mxu0 0.0
        %394 = vmatpush.xpose.msra.mxu0 0.0
        %395 = vmatpush.xpose.msra.mxu0 0.0
        %396 = vmatpush.xpose.msra.mxu0 0.0
        %397 = vmatpush.xpose.msra.mxu0 0.0
        %398 = vmatpush.xpose.msra.mxu0 0.0
        %399 = vmatpush.xpose.msra.mxu0 0.0
        %400 = vmatpush.xpose.msra.mxu0 0.0
        %401 = vmatpush.xpose.msra.mxu0 0.0
        %402 = vmatpush.xpose.msra.mxu0 0.0
        %403 = vmatpush.xpose.msra.mxu0 0.0
        %404 = vmatpush.xpose.msra.mxu0 %v390
        %405 = vmatpush.xpose.msra.mxu0 %v387
        %406 = vmatpush.xpose.msra.mxu0 %v384
        %407 = vmatpush.xpose.msra.mxu0 %v381
        %408 = vmatmul.f32.gmra.mxu0 %v285
        %v409 = vpop.f32.mrf.mxu0
        %v410 = vadd.f32 0.0, %v409
        %411 = vmatmul.f32.gmra.mxu0 %v288
        %v412 = vpop.f32.mrf.mxu0
        %v413 = vadd.f32 0.0, %v412
        %414 = vmatmul.f32.gmra.mxu0 %v291
        %v415 = vpop.f32.mrf.mxu0
        %v416 = vadd.f32 0.0, %v415
        %417 = vmatmul.f32.gmra.mxu0 %v294
        %v418 = vpop.f32.mrf.mxu0
        %v419 = vadd.f32 0.0, %v418
        %420 = vmatmul.f32.gmra.mxu0 %v297
        %v421 = vpop.f32.mrf.mxu0
        %v422 = vadd.f32 0.0, %v421
        %423 = vmatmul.f32.gmra.mxu0 %v300
        %v424 = vpop.f32.mrf.mxu0
        %v425 = vadd.f32 0.0, %v424
        %426 = vmatmul.f32.gmra.mxu0 %v303
        %v427 = vpop.f32.mrf.mxu0
        %v428 = vadd.f32 0.0, %v427
        %429 = vmatmul.f32.gmra.mxu0 %v306
        %v430 = vpop.f32.mrf.mxu0
        %v431 = vadd.f32 0.0, %v430
        %432 = vmatmul.f32.gmra.mxu0 %v309
        %v433 = vpop.f32.mrf.mxu0
        %v434 = vadd.f32 0.0, %v433
        %435 = vmatmul.f32.gmra.mxu0 %v312
        %v436 = vpop.f32.mrf.mxu0
        %v437 = vadd.f32 0.0, %v436
        %438 = vmatmul.f32.gmra.mxu0 %v315
        %v439 = vpop.f32.mrf.mxu0
        %v440 = vadd.f32 0.0, %v439
        %441 = vmatmul.f32.gmra.mxu0 %v318
        %v442 = vpop.f32.mrf.mxu0
        %v443 = vadd.f32 0.0, %v442
        %444 = vmatmul.f32.gmra.mxu0 %v321
        %v445 = vpop.f32.mrf.mxu0
        %v446 = vadd.f32 0.0, %v445
        %447 = vmatmul.f32.gmra.mxu0 %v324
        %v448 = vpop.f32.mrf.mxu0
        %v449 = vadd.f32 0.0, %v448
        %450 = vmatmul.f32.gmra.mxu0 %v327
        %v451 = vpop.f32.mrf.mxu0
        %v452 = vadd.f32 0.0, %v451
        %453 = vmatmul.f32.gmra.mxu0 %v330
        %v454 = vpop.f32.mrf.mxu0
        %v455 = vadd.f32 0.0, %v454
        %456 = vmatmul.f32.gmra.mxu0 %v333
        %v457 = vpop.f32.mrf.mxu0
        %v458 = vadd.f32 0.0, %v457
        %459 = vmatmul.f32.gmra.mxu0 %v336
        %v460 = vpop.f32.mrf.mxu0
        %v461 = vadd.f32 0.0, %v460
        %462 = vmatmul.f32.gmra.mxu0 %v339
        %v463 = vpop.f32.mrf.mxu0
        %v464 = vadd.f32 0.0, %v463
        %465 = vmatmul.f32.gmra.mxu0 %v342
        %v466 = vpop.f32.mrf.mxu0
        %v467 = vadd.f32 0.0, %v466
        %468 = vmatmul.f32.gmra.mxu0 %v345
        %v469 = vpop.f32.mrf.mxu0
        %v470 = vadd.f32 0.0, %v469
        %471 = vmatmul.f32.gmra.mxu0 %v348
        %v472 = vpop.f32.mrf.mxu0
        %v473 = vadd.f32 0.0, %v472
        %474 = vmatmul.f32.gmra.mxu0 %v351
        %v475 = vpop.f32.mrf.mxu0
        %v476 = vadd.f32 0.0, %v475
        %477 = vmatmul.f32.gmra.mxu0 %v354
        %v478 = vpop.f32.mrf.mxu0
        %v479 = vadd.f32 0.0, %v478
        %480 = vmatmul.f32.gmra.mxu0 %v357
        %v481 = vpop.f32.mrf.mxu0
        %v482 = vadd.f32 0.0, %v481
        %483 = vmatmul.f32.gmra.mxu0 %v360
        %v484 = vpop.f32.mrf.mxu0
        %v485 = vadd.f32 0.0, %v484
        %486 = vmatmul.f32.gmra.mxu0 %v363
        %v487 = vpop.f32.mrf.mxu0
        %v488 = vadd.f32 0.0, %v487
        %489 = vmatmul.f32.gmra.mxu0 %v366
        %v490 = vpop.f32.mrf.mxu0
        %v491 = vadd.f32 0.0, %v490
        %492 = vmatmul.f32.gmra.mxu0 %v369
        %v493 = vpop.f32.mrf.mxu0
        %v494 = vadd.f32 0.0, %v493
        %495 = vmatmul.f32.gmra.mxu0 %v372
        %v496 = vpop.f32.mrf.mxu0
        %v497 = vadd.f32 0.0, %v496
        %498 = vmatmul.f32.gmra.mxu0 %v375
        %v499 = vpop.f32.mrf.mxu0
        %v500 = vadd.f32 0.0, %v499
        %501 = vmatmul.f32.gmra.mxu0 %v378
        %v502 = vpop.f32.mrf.mxu0
        %v503 = vadd.f32 0.0, %v502
        %504 = vdwg.mxu0
        %v505 = vmax.f32 %v410, 0.0
        %v506 = vmax.f32 %v413, 0.0
        %v507 = vmax.f32 %v416, 0.0
        %v508 = vmax.f32 %v419, 0.0
        %v509 = vmax.f32 %v422, 0.0
        %v510 = vmax.f32 %v425, 0.0
        %v511 = vmax.f32 %v428, 0.0
        %v512 = vmax.f32 %v431, 0.0
        %v513 = vmax.f32 %v434, 0.0
        %v514 = vmax.f32 %v437, 0.0
        %v515 = vmax.f32 %v440, 0.0
        %v516 = vmax.f32 %v443, 0.0
        %v517 = vmax.f32 %v446, 0.0
        %v518 = vmax.f32 %v449, 0.0
        %v519 = vmax.f32 %v452, 0.0
        %v520 = vmax.f32 %v455, 0.0
        %v521 = vmax.f32 %v458, 0.0
        %v522 = vmax.f32 %v461, 0.0
        %v523 = vmax.f32 %v464, 0.0
        %v524 = vmax.f32 %v467, 0.0
        %v525 = vmax.f32 %v470, 0.0
        %v526 = vmax.f32 %v473, 0.0
        %v527 = vmax.f32 %v476, 0.0
        %v528 = vmax.f32 %v479, 0.0
        %v529 = vmax.f32 %v482, 0.0
        %v530 = vmax.f32 %v485, 0.0
        %v531 = vmax.f32 %v488, 0.0
        %v532 = vmax.f32 %v491, 0.0
        %v533 = vmax.f32 %v494, 0.0
        %v534 = vmax.f32 %v497, 0.0
        %v535 = vmax.f32 %v500, 0.0
        %v536 = vmax.f32 %v503, 0.0
        %vm537 = vcmask 261120
        %v539 = vsel %vm537, %v250, 0
        %v542 = vsel %vm537, %v505, 0
        %v545 = vsel %vm537, %v506, 0
        %v548 = vsel %vm537, %v507, 0
        %v551 = vsel %vm537, %v508, 0
        %v554 = vsel %vm537, %v509, 0
        %v557 = vsel %vm537, %v510, 0
        %v560 = vsel %vm537, %v511, 0
        %v563 = vsel %vm537, %v512, 0
        %v566 = vsel %vm537, %v513, 0
        %v569 = vsel %vm537, %v514, 0
        %v572 = vsel %vm537, %v515, 0
        %v575 = vsel %vm537, %v516, 0
        %v578 = vsel %vm537, %v517, 0
        %v581 = vsel %vm537, %v518, 0
        %v584 = vsel %vm537, %v519, 0
        %v587 = vsel %vm537, %v520, 0
        %v590 = vsel %vm537, %v521, 0
        %v593 = vsel %vm537, %v522, 0
        %v596 = vsel %vm537, %v523, 0
        %v599 = vsel %vm537, %v524, 0
        %v602 = vsel %vm537, %v525, 0
        %v605 = vsel %vm537, %v526, 0
        %v608 = vsel %vm537, %v527, 0
        %v611 = vsel %vm537, %v528, 0
        %v614 = vsel %vm537, %v529, 0
        %v617 = vsel %vm537, %v530, 0
        %v620 = vsel %vm537, %v531, 0
        %v623 = vsel %vm537, %v532, 0
        %v626 = vsel %vm537, %v533, 0
        %v629 = vsel %vm537, %v534, 0
        %v632 = vsel %vm537, %v535, 0
        %v635 = vsel %vm537, %v536, 0
        %637 = vmatpush.xpose.msra.mxu0 %v587
        %638 = vmatpush.xpose.msra.mxu0 %v584
        %639 = vmatpush.xpose.msra.mxu0 %v581
        %640 = vmatpush.xpose.msra.mxu0 %v578
        %641 = vmatpush.xpose.msra.mxu0 %v575
        %642 = vmatpush.xpose.msra.mxu0 %v572
        %643 = vmatpush.xpose.msra.mxu0 %v569
        %644 = vmatpush.xpose.msra.mxu0 %v566
        %645 = vmatpush.xpose.msra.mxu0 %v563
        %646 = vmatpush.xpose.msra.mxu0 %v560
        %647 = vmatpush.xpose.msra.mxu0 %v557
        %648 = vmatpush.xpose.msra.mxu0 %v554
        %649 = vmatpush.xpose.msra.mxu0 %v551
        %650 = vmatpush.xpose.msra.mxu0 %v548
        %651 = vmatpush.xpose.msra.mxu0 %v545
        %652 = vmatpush.xpose.msra.mxu0 %v542
        %653 = vmatmul.f32.gmra.mxu0 %v539
        %v654 = vpop.f32.mrf.mxu0
        %v655 = vadd.f32 0.0, %v654
        %656 = vdwg.mxu0
        %657 = vmatpush.xpose.msra.mxu0 %v635
        %658 = vmatpush.xpose.msra.mxu0 %v632
        %659 = vmatpush.xpose.msra.mxu0 %v629
        %660 = vmatpush.xpose.msra.mxu0 %v626
        %661 = vmatpush.xpose.msra.mxu0 %v623
        %662 = vmatpush.xpose.msra.mxu0 %v620
        %663 = vmatpush.xpose.msra.mxu0 %v617
        %664 = vmatpush.xpose.msra.mxu0 %v614
        %665 = vmatpush.xpose.msra.mxu0 %v611
        %666 = vmatpush.xpose.msra.mxu0 %v608
        %667 = vmatpush.xpose.msra.mxu0 %v605
        %668 = vmatpush.xpose.msra.mxu0 %v602
        %669 = vmatpush.xpose.msra.mxu0 %v599
        %670 = vmatpush.xpose.msra.mxu0 %v596
        %671 = vmatpush.xpose.msra.mxu0 %v593
        %672 = vmatpush.xpose.msra.mxu0 %v590
        %673 = vmatmul.f32.gmra.mxu0 %v539
        %v674 = vpop.f32.mrf.mxu0
        %v675 = vadd.f32 0.0, %v674
        %676 = vdwg.mxu0
        %677 = vst [vmem:[%s224] sm:$0xff] %v655
        %678 = vst [vmem:[%s224 + $0x8] sm:$0xff] %v675
        %s679 = sand.u32 %s126, 1
        %s680 = scalar_lea.sflag [#allocation3], %s679
        %s681 = sand.u32 %s126, 1
        %s682 = smul.addr %s681, 16
        %s683 = scalar_lea.vmem [#allocation2], %s682
        // Predicated region
        $region33: #{tpu_custom_call.1} parent=31 // pred_check
          %p684 = pneg %p136
        $region34: #{tpu_custom_call.1} parent=31 // pred_check_branch
          %686 = sbr.rel (%p684) target = $region36
        $region35: #{tpu_custom_call.1} parent=31 // pred_region
          %s687 = smul.u32 2, %s23
          %689 = vsyncadd %s680, 0
          %s690 = smul.addr %s22, 2
          %s691 = sadd.s32 %s687, %s690
          %s692 = smul.addr %s691, 8
          %s693 = scalar_lea.hbm %s3, %s692
          %s695 = sshll.u32 %s683, 4
          %s696 = int_to_ptr.vmem [resolvable:$true] %s695
          %s697 = sshll.u32 %s693, 4
          %s698 = int_to_ptr.hbm [resolvable:$true] %s697
          %700 = dma.vmem_to_hbm [thread:$0]  %s696, 256, %s698, %s680
        $region36: #{tpu_custom_call.1} parent=31 // pred_fallthru
          _
      $region32: #{tpu_custom_call.1} parent=5 // pred_fallthru
        _
      %p701 = scmp.le.s32.totalorder 2, %s12
      // Predicated region
      $region37: #{tpu_custom_call.1} parent=5 // pred_check
        %p702 = pneg %p701
      $region38: #{tpu_custom_call.1} parent=5 // pred_check_branch
        %704 = sbr.rel (%p702) target = $region40
      $region39: #{tpu_custom_call.1} parent=5 // pred_region
        %s705 = ssub.s32 %s12, 2
        // Predicated region
        $region41: #{tpu_custom_call.1} parent=39 // pred_check
          %p706 = pneg %p142
        $region42: #{tpu_custom_call.1} parent=39 // pred_check_branch
          %708 = sbr.rel (%p706) target = $region44
        $region43: #{tpu_custom_call.1} parent=39 // pred_region
          %s709 = sand.u32 %s127, 1
          %s710 = scalar_lea.sflag [#allocation3], %s709
          %s711 = sand.u32 %s127, 1
          %s712 = smul.addr %s711, 16
          %s713 = scalar_lea.vmem [#allocation2], %s712
          %715 = dma.done %s710, 256
        $region44: #{tpu_custom_call.1} parent=39 // pred_fallthru
          _
      $region40: #{tpu_custom_call.1} parent=5 // pred_fallthru
        _
    $region6: #{tpu_custom_call.1} parent=1 // loop_footer
      %s16 = sadd.s32 1, %s12
    $region7: #{tpu_custom_call.1} parent=1 // loop_footer_branch
      %11 = sbr.rel target = $region3
    $region8: #{tpu_custom_call.1} parent=1 // loop_exit
      _
    %716 = vsyncpa [#allocation3], 1
    %s717 = scalar_lea.sflag [#allocation3], 1
    %718 = vsyncpa %s717, 1

</llo_original>
